<compile_context>
chip_gen: v7x
topology: tpu7x:2x2x1
jax: 0.10.0
libtpu: 0.0.40
codegen_flags: <defaults>
</compile_context>

<pallas_src>
import functools

import jax
import jax.numpy as jnp
from jax import lax
from jax.experimental import pallas as pl
from jax.experimental.pallas import tpu as pltpu

_LANES = 128
_VREG_BUDGET = 160 * 1024          # per-chunk live-value budget (vregs total 256 KiB)
_VMEM_BUF_BUDGET = 4 * 1024 * 1024  # per pipeline buffer (double-buffered by Pallas)


def _round_up(x, m):
    return (x + m - 1) // m * m


def _pick_row_tile(ho, wo, wp, cin_p, cout_p, stride, in_itemsize, out_itemsize):
    """Largest divisor of Ho whose halo'd bf16 input window and output tile each fit
    the per-buffer budget (prefer >= 2 row tiles so the pipeline has depth)."""
    cap = ho if ho <= 1 else max(1, ho // 2)
    best = 1
    for th in range(1, cap + 1):
        if ho % th:
            continue
        th_in = (th - 1) * stride + 3
        if th_in * wp * cin_p * in_itemsize > _VMEM_BUF_BUDGET:
            continue
        if th * wo * cout_p * out_itemsize > _VMEM_BUF_BUDGET:
            continue
        best = th
    return best


def _pick_chunk(th, wp, cin_p, stride):
    """Output rows per in-kernel chunk: bound simultaneous live values (f32 acc +
    bf16 partial + bf16 input rows) to roughly the vreg budget."""
    per_row = wp * cin_p * (4 + 2 + 2 * stride)
    cap = max(1, min(16, _VREG_BUDGET // max(per_row, 1)))
    ch = 1
    for c in range(1, th + 1):
        if th % c == 0 and c <= cap:
            ch = c
    return ch


def _dwsep_kernel(x_hbm, dw_w_ref, pw_w_ref, pw_b_ref, o_ref, xbuf, sem, *,
                  stride, th, th_in, ch, wo, wp):
    # x_hbm:    (N, Hp, Wp, Cp)      padded bf16 NHWC input, left in HBM (pl.ANY)
    # dw_w_ref: (3, 3, Cp)           depthwise weights (bf16)
    # pw_w_ref: (Cp, Cop)            pointwise weights (bf16)
    # pw_b_ref: (1, Cop)             fused bias = pw_b + pw_w @ dw_b (f32)
    # o_ref:    (1, th, Wo, Cop)     output row tile (lane-dense Cop)
    # xbuf:     (2, th_in, Wp, Cp)   double-buffered bf16 input row window (VMEM)
    # sem:      (2,)                 DMA semaphores
    b = pl.program_id(0)
    r = pl.program_id(1)
    nr = pl.num_programs(1)
    slot = r % 2

    def copy_for(row_tile, s):
        # Single helper so .start() and .wait() always use identical descriptors.
        return pltpu.make_async_copy(
            x_hbm.at[b, pl.ds(row_tile * (th * stride), th_in)],
            xbuf.at[s], sem.at[s])

    # First row tile of this batch element: nothing is in flight yet.
    @pl.when(r == 0)
    def _():
        copy_for(0, slot).start()

    # Wait for the current row window (started above or prefetched last step).
    copy_for(r, slot).wait()

    # Prefetch the next row tile of the same batch element (hidden behind compute).
    @pl.when(r + 1 < nr)
    def _():
        copy_for(r + 1, 1 - slot).start()

    dw_w = dw_w_ref[...]                      # (3, 3, Cp) bf16 — small, hoisted
    pw_b = pw_b_ref[...]                      # (1, Cop) f32 (dw bias already folded)
    cp = dw_w.shape[-1]
    ch_in = (ch - 1) * stride + 3
    n_chunks = th // ch

    def select_cols(a, kw):
        # column kw-shift + stride selection in one (aligned-start for kw == 0)
        if stride == 1:
            return a[:, kw:kw + wo, :]
        return a[:, kw:kw + (wo - 1) * stride + 1:stride, :]

    def chunk(c, carry):
        row0 = pl.multiple_of(c * ch, ch)                       # output rows in tile
        in_row0 = pl.multiple_of(c * (ch * stride), ch * stride)  # input rows in xbuf
        win = xbuf[slot, pl.ds(in_row0, ch_in)]                 # (ch_in, Wp, Cp) bf16

        # Depthwise 3x3: for each kw accumulate the 3 kh taps over the full padded
        # width in bf16 on the VPU; combine the three kw accumulators with shifted
        # column extractions in f32 (2 shifts per chunk instead of 6 per-tap ones).
        acc = None
        for kw in range(3):
            part = None
            for kh in range(3):
                if stride == 1:
                    rows = win[kh:kh + ch]
                else:
                    rows = win[kh:kh + (ch - 1) * stride + 1:stride]
                t = rows * dw_w[kh, kw].reshape(1, 1, cp)        # bf16 VPU
                part = t if part is None else part + t
            part = select_cols(part.astype(jnp.float32), kw)     # (ch, Wo, Cp) f32
            acc = part if acc is None else acc + part

        # Pointwise 1x1 on the MXU (bf16 x bf16, f32 accumulation) + fused bias.
        flat = acc.reshape(ch * wo, cp).astype(jnp.bfloat16)
        out = jnp.dot(flat, pw_w_ref[...], preferred_element_type=jnp.float32)
        out = out + pw_b
        o_ref[0, pl.ds(row0, ch)] = out.reshape(ch, wo, -1).astype(o_ref.dtype)
        return carry

    lax.fori_loop(0, n_chunks, chunk, 0)


def depthwise_separable_conv_3x3(x_nchw, dw_w, dw_b, pw_w, pw_b, *, stride=1):
    """x_nchw: (N, Cin, H, W); dw_w: (Cin, 1, 3, 3); dw_b: (Cin,);
    pw_w: (Cout, Cin, 1, 1); pw_b: (Cout,). Returns (N, Cout, Ho, Wo)."""
    n, cin, h, w = x_nchw.shape
    cout = pw_w.shape[0]
    ho = (h + 2 - 3) // stride + 1
    wo = (w + 2 - 3) // stride + 1
    hp = h + 2
    wp = _round_up(w + 2, 8)                      # sublane-friendly padded width
    cin_p = _round_up(cin, _LANES)
    cout_p = _round_up(cout, _LANES)
    out_dtype = x_nchw.dtype
    out_isize = jnp.dtype(out_dtype).itemsize

    # NCHW -> NHWC, conv pad=1, channel pad to full lanes, bf16 for HBM/VMEM.
    # (One fused XLA pass outside the kernel; folding the layout change into the
    # kernel's DMA would remove it entirely but keeps the kernel NCHW-aware.)
    x_nhwc = jnp.transpose(x_nchw, (0, 2, 3, 1)).astype(jnp.bfloat16)
    x_pad = jnp.pad(x_nhwc, ((0, 0), (1, 1), (1, wp - w - 1), (0, cin_p - cin)))

    dw_w_k = jnp.pad(jnp.transpose(dw_w[:, 0, :, :], (1, 2, 0)),
                     ((0, 0), (0, 0), (0, cin_p - cin))).astype(jnp.bfloat16)
    pw_mat = jnp.transpose(pw_w[:, :, 0, 0], (1, 0)).astype(jnp.float32)  # (Cin, Cout)
    # Fold depthwise bias into pointwise bias: pw(x + dw_b) = pw(x) + pw_w @ dw_b.
    fused_b = pw_b.astype(jnp.float32) + dw_b.astype(jnp.float32) @ pw_mat
    pw_w_k = jnp.pad(pw_mat, ((0, cin_p - cin), (0, cout_p - cout))).astype(jnp.bfloat16)
    pw_b_k = jnp.pad(fused_b, (0, cout_p - cout)).reshape(1, cout_p)

    th = _pick_row_tile(ho, wo, wp, cin_p, cout_p, stride, 2, out_isize)
    nr = ho // th
    th_in = (th - 1) * stride + 3
    ch = _pick_chunk(th, wp, cin_p, stride)

    kernel = functools.partial(_dwsep_kernel, stride=stride, th=th, th_in=th_in,
                               ch=ch, wo=wo, wp=wp)

    flops = 2 * n * ho * wo * cin_p * (9 + cout_p)
    bytes_accessed = (n * hp * wp * cin_p * 2            # bf16 input read
                      + n * ho * wo * cout_p * out_isize  # output write
                      + cin_p * cout_p * 2                # pw_w (bf16)
                      + 9 * cin_p * 2 + cout_p * 4)       # dw_w + fused bias

    out_nhwc = pl.pallas_call(
        kernel,
        out_shape=jax.ShapeDtypeStruct((n, ho, wo, cout_p), out_dtype),
        grid=(n, nr),
        in_specs=[
            pl.BlockSpec(memory_space=pl.ANY),                     # x stays in HBM
            pl.BlockSpec((3, 3, cin_p), lambda b, r: (0, 0, 0)),
            pl.BlockSpec((cin_p, cout_p), lambda b, r: (0, 0)),
            pl.BlockSpec((1, cout_p), lambda b, r: (0, 0)),
        ],
        out_specs=pl.BlockSpec((1, th, wo, cout_p), lambda b, r: (b, r, 0, 0)),
        scratch_shapes=[
            pltpu.VMEM((2, th_in, wp, cin_p), jnp.bfloat16),
            pltpu.SemaphoreType.DMA((2,)),
        ],
        compiler_params=pltpu.CompilerParams(
            dimension_semantics=("parallel", "arbitrary"),
            vmem_limit_bytes=48 * 1024 * 1024),
        cost_estimate=pl.CostEstimate(
            flops=flops, transcendentals=0, bytes_accessed=bytes_accessed),
    )(x_pad, dw_w_k, pw_w_k, pw_b_k)

    # Drop channel padding, NHWC -> NCHW (PyTorch convention).
    return jnp.transpose(out_nhwc[:, :, :, :cout], (0, 3, 1, 2))


def _reference(x_nchw, dw_w, dw_b, pw_w, pw_b, *, stride=1):
    """Pure-JAX reference via lax.conv_general_dilated (NCHW / OIHW)."""
    cin = x_nchw.shape[1]
    dw = lax.conv_general_dilated(
        x_nchw, dw_w, window_strides=(stride, stride), padding=((1, 1), (1, 1)),
        dimension_numbers=("NCHW", "OIHW", "NCHW"), feature_group_count=cin)
    dw = dw + dw_b.reshape(1, -1, 1, 1)
    pw = lax.conv_general_dilated(
        dw, pw_w, window_strides=(1, 1), padding=((0, 0), (0, 0)),
        dimension_numbers=("NCHW", "OIHW", "NCHW"))
    return pw + pw_b.reshape(1, -1, 1, 1)


if __name__ == "__main__":
    key = jax.random.PRNGKey(0)
    k_x, k_dw, k_db, k_pw, k_pb = jax.random.split(key, 5)

    N, CIN, COUT, H, W = 2, 4, 8, 16, 16
    STRIDE = 1

    x = jax.random.normal(k_x, (N, CIN, H, W), jnp.float32)
    # Deterministic synthetic parameters (same shapes as the nn.Conv2d layers).
    dw_w = jax.random.normal(k_dw, (CIN, 1, 3, 3), jnp.float32) * 0.2
    dw_b = jax.random.normal(k_db, (CIN,), jnp.float32) * 0.1
    pw_w = jax.random.normal(k_pw, (COUT, CIN, 1, 1), jnp.float32) * 0.2
    pw_b = jax.random.normal(k_pb, (COUT,), jnp.float32) * 0.1

    out = depthwise_separable_conv_3x3(x, dw_w, dw_b, pw_w, pw_b, stride=STRIDE)
    out = jax.block_until_ready(out)

    ref = _reference(x, dw_w, dw_b, pw_w, pw_b, stride=STRIDE)
    assert out.shape == ref.shape == (N, COUT, H // STRIDE, W // STRIDE)
    # bf16 input / bf16 depthwise taps / bf16 MXU (f32 accumulation) -> relaxed tol.
    err = float(jnp.max(jnp.abs(out - ref)))
    assert jnp.allclose(out, ref, atol=5e-2, rtol=5e-2), err

    print("KERNEL_OK")
</pallas_src>

<mosaic_0001>
module attributes {stable_mosaic.version = 11 : i64} {
  func.func @_dwsep_kernel(%arg0: i32, %arg1: i32, %arg2: memref<2x18x24x128xbf16, #tpu.memory_space<any>>, %arg3: memref<3x3x128xbf16, #tpu.memory_space<vmem>>, %arg4: memref<128x128xbf16, #tpu.memory_space<vmem>>, %arg5: memref<1x128xf32, #tpu.memory_space<vmem>>, %arg6: memref<1x8x16x128xf32, #tpu.memory_space<vmem>>, %arg7: memref<2x10x24x128xbf16, #tpu.memory_space<vmem>>, %arg8: memref<2x!tpu.dma_semaphore, #tpu.memory_space<semaphore_mem>>) attributes {dimension_semantics = [#tpu.dimension_semantics<parallel>, #tpu.dimension_semantics<arbitrary>], iteration_bounds = array<i64: 2, 2>, scalar_prefetch = 0 : i64, scratch_operands = 2 : i64, tpu.core_type = #tpu.core_type<tc>, window_params = [{}, {pipeline_mode = #tpu.pipeline_mode<synchronous>, transform_indices = @transform_1, window_bounds = array<i64: 3, 3, 128>}, {pipeline_mode = #tpu.pipeline_mode<synchronous>, transform_indices = @transform_2, window_bounds = array<i64: 128, 128>}, {pipeline_mode = #tpu.pipeline_mode<synchronous>, transform_indices = @transform_3, window_bounds = array<i64: 1, 128>}, {transform_indices = @transform_4, window_bounds = array<i64: 1, 8, 16, 128>}]} {
    %c2_i32 = arith.constant 2 : i32
    %c0_i32 = arith.constant 0 : i32
    %0 = arith.cmpi eq, %c2_i32, %c0_i32 : i32
    %c1_i32 = arith.constant 1 : i32
    %1 = arith.select %0, %c1_i32, %c2_i32 : i32
    %2 = arith.remsi %arg1, %1 : i32
    %c0_i32_0 = arith.constant 0 : i32
    %3 = arith.cmpi ne, %2, %c0_i32_0 : i32
    %c0_i32_1 = arith.constant 0 : i32
    %4 = arith.cmpi slt, %2, %c0_i32_1 : i32
    %c0_i32_2 = arith.constant 0 : i32
    %5 = arith.cmpi slt, %1, %c0_i32_2 : i32
    %6 = arith.xori %4, %5 : i1
    %7 = arith.andi %6, %3 : i1
    %8 = arith.addi %2, %1 : i32
    %9 = arith.select %7, %8, %2 : i32
    %c0_i32_3 = arith.constant 0 : i32
    %10 = arith.cmpi eq, %arg1, %c0_i32_3 : i32
    %11 = arith.extui %10 : i1 to i32
    %c0_i32_4 = arith.constant 0 : i32
    %12 = arith.cmpi ne, %11, %c0_i32_4 : i32
    scf.if %12 {
      %c0_i32_21 = arith.constant 0 : i32
      %c0_i32_22 = arith.constant 0 : i32
      %c0_i32_23 = arith.constant 0 : i32
      %27 = tpu.memref_slice %arg2[%arg0, %c0_i32_21, %c0_i32_22, %c0_i32_23] : memref<2x18x24x128xbf16, #tpu.memory_space<any>> -> memref<1x10x24x128xbf16, #tpu.memory_space<any>>
      %28 = tpu.memref_squeeze %27 : memref<1x10x24x128xbf16, #tpu.memory_space<any>> -> memref<10x24x128xbf16, #tpu.memory_space<any>>
      %c0_i32_24 = arith.constant 0 : i32
      %c0_i32_25 = arith.constant 0 : i32
      %c0_i32_26 = arith.constant 0 : i32
      %29 = tpu.memref_slice %arg7[%9, %c0_i32_24, %c0_i32_25, %c0_i32_26] : memref<2x10x24x128xbf16, #tpu.memory_space<vmem>> -> memref<1x10x24x128xbf16, #tpu.memory_space<vmem>>
      %30 = tpu.memref_squeeze %29 : memref<1x10x24x128xbf16, #tpu.memory_space<vmem>> -> memref<10x24x128xbf16, #tpu.memory_space<vmem>>
      %31 = tpu.memref_slice %arg8[%9] : memref<2x!tpu.dma_semaphore, #tpu.memory_space<semaphore_mem>> -> memref<1x!tpu.dma_semaphore, #tpu.memory_space<semaphore_mem>>
      %32 = tpu.memref_squeeze %31 : memref<1x!tpu.dma_semaphore, #tpu.memory_space<semaphore_mem>> -> memref<!tpu.dma_semaphore, #tpu.memory_space<semaphore_mem>>
      tpu.enqueue_dma source(%28 : memref<10x24x128xbf16, #tpu.memory_space<any>>) target(%30 : memref<10x24x128xbf16, #tpu.memory_space<vmem>>) target_semaphore(%32 : memref<!tpu.dma_semaphore, #tpu.memory_space<semaphore_mem>>)
    } else {
    }
    %c8_i32 = arith.constant 8 : i32
    %13 = arith.muli %arg1, %c8_i32 : i32
    %c0_i32_5 = arith.constant 0 : i32
    %c0_i32_6 = arith.constant 0 : i32
    %14 = tpu.memref_slice %arg2[%arg0, %13, %c0_i32_5, %c0_i32_6] : memref<2x18x24x128xbf16, #tpu.memory_space<any>> -> memref<1x10x24x128xbf16, #tpu.memory_space<any>>
    %15 = tpu.memref_squeeze %14 : memref<1x10x24x128xbf16, #tpu.memory_space<any>> -> memref<10x24x128xbf16, #tpu.memory_space<any>>
    %c0_i32_7 = arith.constant 0 : i32
    %c0_i32_8 = arith.constant 0 : i32
    %c0_i32_9 = arith.constant 0 : i32
    %16 = tpu.memref_slice %arg7[%9, %c0_i32_7, %c0_i32_8, %c0_i32_9] : memref<2x10x24x128xbf16, #tpu.memory_space<vmem>> -> memref<1x10x24x128xbf16, #tpu.memory_space<vmem>>
    %17 = tpu.memref_squeeze %16 : memref<1x10x24x128xbf16, #tpu.memory_space<vmem>> -> memref<10x24x128xbf16, #tpu.memory_space<vmem>>
    %18 = tpu.memref_slice %arg8[%9] : memref<2x!tpu.dma_semaphore, #tpu.memory_space<semaphore_mem>> -> memref<1x!tpu.dma_semaphore, #tpu.memory_space<semaphore_mem>>
    %19 = tpu.memref_squeeze %18 : memref<1x!tpu.dma_semaphore, #tpu.memory_space<semaphore_mem>> -> memref<!tpu.dma_semaphore, #tpu.memory_space<semaphore_mem>>
    tpu.wait_dma2 semaphore(%19 : memref<!tpu.dma_semaphore, #tpu.memory_space<semaphore_mem>>) src(%15 : memref<10x24x128xbf16, #tpu.memory_space<any>>) dst(%17 : memref<10x24x128xbf16, #tpu.memory_space<vmem>>)
    %c1_i32_10 = arith.constant 1 : i32
    %20 = arith.addi %arg1, %c1_i32_10 : i32
    %c2_i32_11 = arith.constant 2 : i32
    %21 = arith.cmpi slt, %20, %c2_i32_11 : i32
    %22 = arith.extui %21 : i1 to i32
    %c0_i32_12 = arith.constant 0 : i32
    %23 = arith.cmpi ne, %22, %c0_i32_12 : i32
    scf.if %23 {
      %c1_i32_21 = arith.constant 1 : i32
      %27 = arith.addi %arg1, %c1_i32_21 : i32
      %c1_i32_22 = arith.constant 1 : i32
      %28 = arith.subi %c1_i32_22, %9 : i32
      %c8_i32_23 = arith.constant 8 : i32
      %29 = arith.muli %27, %c8_i32_23 : i32
      %c0_i32_24 = arith.constant 0 : i32
      %c0_i32_25 = arith.constant 0 : i32
      %30 = tpu.memref_slice %arg2[%arg0, %29, %c0_i32_24, %c0_i32_25] : memref<2x18x24x128xbf16, #tpu.memory_space<any>> -> memref<1x10x24x128xbf16, #tpu.memory_space<any>>
      %31 = tpu.memref_squeeze %30 : memref<1x10x24x128xbf16, #tpu.memory_space<any>> -> memref<10x24x128xbf16, #tpu.memory_space<any>>
      %c0_i32_26 = arith.constant 0 : i32
      %c0_i32_27 = arith.constant 0 : i32
      %c0_i32_28 = arith.constant 0 : i32
      %32 = tpu.memref_slice %arg7[%28, %c0_i32_26, %c0_i32_27, %c0_i32_28] : memref<2x10x24x128xbf16, #tpu.memory_space<vmem>> -> memref<1x10x24x128xbf16, #tpu.memory_space<vmem>>
      %33 = tpu.memref_squeeze %32 : memref<1x10x24x128xbf16, #tpu.memory_space<vmem>> -> memref<10x24x128xbf16, #tpu.memory_space<vmem>>
      %34 = tpu.memref_slice %arg8[%28] : memref<2x!tpu.dma_semaphore, #tpu.memory_space<semaphore_mem>> -> memref<1x!tpu.dma_semaphore, #tpu.memory_space<semaphore_mem>>
      %35 = tpu.memref_squeeze %34 : memref<1x!tpu.dma_semaphore, #tpu.memory_space<semaphore_mem>> -> memref<!tpu.dma_semaphore, #tpu.memory_space<semaphore_mem>>
      tpu.enqueue_dma source(%31 : memref<10x24x128xbf16, #tpu.memory_space<any>>) target(%33 : memref<10x24x128xbf16, #tpu.memory_space<vmem>>) target_semaphore(%35 : memref<!tpu.dma_semaphore, #tpu.memory_space<semaphore_mem>>)
    } else {
    }
    %c0 = arith.constant 0 : index
    %c0_13 = arith.constant 0 : index
    %c0_14 = arith.constant 0 : index
    %24 = vector.load %arg3[%c0, %c0_13, %c0_14] : memref<3x3x128xbf16, #tpu.memory_space<vmem>>, vector<3x3x128xbf16>
    %c0_15 = arith.constant 0 : index
    %c0_16 = arith.constant 0 : index
    %25 = vector.load %arg5[%c0_15, %c0_16] : memref<1x128xf32, #tpu.memory_space<vmem>>, vector<1x128xf32>
    %c0_i32_17 = arith.constant 0 : i32
    %c2_i32_18 = arith.constant 2 : i32
    %26 = arith.addi %c0_i32_17, %c2_i32_18 : i32
    %c1_i32_19 = arith.constant 1 : i32
    scf.for %arg9 = %c0_i32_17 to %26 step %c1_i32_19  : i32 {
      %c4_i32 = arith.constant 4 : i32
      %27 = arith.muli %arg9, %c4_i32 : i32
      %28 = tpu.assume_multiple %27, 4 : i32
      %c4_i32_21 = arith.constant 4 : i32
      %29 = arith.muli %arg9, %c4_i32_21 : i32
      %30 = tpu.assume_multiple %29, 4 : i32
      %31 = arith.index_cast %9 : i32 to index
      %32 = arith.index_cast %30 : i32 to index
      %c0_22 = arith.constant 0 : index
      %c0_23 = arith.constant 0 : index
      %33 = vector.load %arg7[%31, %32, %c0_22, %c0_23] : memref<2x10x24x128xbf16, #tpu.memory_space<vmem>>, vector<1x6x24x128xbf16>
      %34 = vector.shape_cast %33 : vector<1x6x24x128xbf16> to vector<6x24x128xbf16>
      %35 = vector.extract_strided_slice %34 {offsets = [0, 0, 0], sizes = [4, 24, 128], strides = [1, 1, 1]} : vector<6x24x128xbf16> to vector<4x24x128xbf16>
      %36 = vector.extract_strided_slice %24 {offsets = [0, 0, 0], sizes = [1, 1, 128], strides = [1, 1, 1]} : vector<3x3x128xbf16> to vector<1x1x128xbf16>
      %37 = vector.shape_cast %36 : vector<1x1x128xbf16> to vector<128xbf16>
      %38 = vector.shape_cast %37 : vector<128xbf16> to vector<1x1x128xbf16>
      %39 = vector.broadcast %38 : vector<1x1x128xbf16> to vector<4x24x128xbf16>
      %40 = arith.mulf %35, %39 : vector<4x24x128xbf16>
      %41 = vector.extract_strided_slice %34 {offsets = [1, 0, 0], sizes = [4, 24, 128], strides = [1, 1, 1]} : vector<6x24x128xbf16> to vector<4x24x128xbf16>
      %42 = vector.extract_strided_slice %24 {offsets = [1, 0, 0], sizes = [1, 1, 128], strides = [1, 1, 1]} : vector<3x3x128xbf16> to vector<1x1x128xbf16>
      %43 = vector.shape_cast %42 : vector<1x1x128xbf16> to vector<128xbf16>
      %44 = vector.shape_cast %43 : vector<128xbf16> to vector<1x1x128xbf16>
      %45 = vector.broadcast %44 : vector<1x1x128xbf16> to vector<4x24x128xbf16>
      %46 = arith.mulf %41, %45 : vector<4x24x128xbf16>
      %47 = arith.addf %40, %46 : vector<4x24x128xbf16>
      %48 = vector.extract_strided_slice %34 {offsets = [2, 0, 0], sizes = [4, 24, 128], strides = [1, 1, 1]} : vector<6x24x128xbf16> to vector<4x24x128xbf16>
      %49 = vector.extract_strided_slice %24 {offsets = [2, 0, 0], sizes = [1, 1, 128], strides = [1, 1, 1]} : vector<3x3x128xbf16> to vector<1x1x128xbf16>
      %50 = vector.shape_cast %49 : vector<1x1x128xbf16> to vector<128xbf16>
      %51 = vector.shape_cast %50 : vector<128xbf16> to vector<1x1x128xbf16>
      %52 = vector.broadcast %51 : vector<1x1x128xbf16> to vector<4x24x128xbf16>
      %53 = arith.mulf %48, %52 : vector<4x24x128xbf16>
      %54 = arith.addf %47, %53 : vector<4x24x128xbf16>
      %55 = arith.extf %54 : vector<4x24x128xbf16> to vector<4x24x128xf32>
      %56 = vector.extract_strided_slice %55 {offsets = [0, 0, 0], sizes = [4, 16, 128], strides = [1, 1, 1]} : vector<4x24x128xf32> to vector<4x16x128xf32>
      %57 = vector.extract_strided_slice %34 {offsets = [0, 0, 0], sizes = [4, 24, 128], strides = [1, 1, 1]} : vector<6x24x128xbf16> to vector<4x24x128xbf16>
      %58 = vector.extract_strided_slice %24 {offsets = [0, 1, 0], sizes = [1, 1, 128], strides = [1, 1, 1]} : vector<3x3x128xbf16> to vector<1x1x128xbf16>
      %59 = vector.shape_cast %58 : vector<1x1x128xbf16> to vector<128xbf16>
      %60 = vector.shape_cast %59 : vector<128xbf16> to vector<1x1x128xbf16>
      %61 = vector.broadcast %60 : vector<1x1x128xbf16> to vector<4x24x128xbf16>
      %62 = arith.mulf %57, %61 : vector<4x24x128xbf16>
      %63 = vector.extract_strided_slice %34 {offsets = [1, 0, 0], sizes = [4, 24, 128], strides = [1, 1, 1]} : vector<6x24x128xbf16> to vector<4x24x128xbf16>
      %64 = vector.extract_strided_slice %24 {offsets = [1, 1, 0], sizes = [1, 1, 128], strides = [1, 1, 1]} : vector<3x3x128xbf16> to vector<1x1x128xbf16>
      %65 = vector.shape_cast %64 : vector<1x1x128xbf16> to vector<128xbf16>
      %66 = vector.shape_cast %65 : vector<128xbf16> to vector<1x1x128xbf16>
      %67 = vector.broadcast %66 : vector<1x1x128xbf16> to vector<4x24x128xbf16>
      %68 = arith.mulf %63, %67 : vector<4x24x128xbf16>
      %69 = arith.addf %62, %68 : vector<4x24x128xbf16>
      %70 = vector.extract_strided_slice %34 {offsets = [2, 0, 0], sizes = [4, 24, 128], strides = [1, 1, 1]} : vector<6x24x128xbf16> to vector<4x24x128xbf16>
      %71 = vector.extract_strided_slice %24 {offsets = [2, 1, 0], sizes = [1, 1, 128], strides = [1, 1, 1]} : vector<3x3x128xbf16> to vector<1x1x128xbf16>
      %72 = vector.shape_cast %71 : vector<1x1x128xbf16> to vector<128xbf16>
      %73 = vector.shape_cast %72 : vector<128xbf16> to vector<1x1x128xbf16>
      %74 = vector.broadcast %73 : vector<1x1x128xbf16> to vector<4x24x128xbf16>
      %75 = arith.mulf %70, %74 : vector<4x24x128xbf16>
      %76 = arith.addf %69, %75 : vector<4x24x128xbf16>
      %77 = arith.extf %76 : vector<4x24x128xbf16> to vector<4x24x128xf32>
      %78 = vector.extract_strided_slice %77 {offsets = [0, 1, 0], sizes = [4, 16, 128], strides = [1, 1, 1]} : vector<4x24x128xf32> to vector<4x16x128xf32>
      %79 = arith.addf %56, %78 : vector<4x16x128xf32>
      %80 = vector.extract_strided_slice %34 {offsets = [0, 0, 0], sizes = [4, 24, 128], strides = [1, 1, 1]} : vector<6x24x128xbf16> to vector<4x24x128xbf16>
      %81 = vector.extract_strided_slice %24 {offsets = [0, 2, 0], sizes = [1, 1, 128], strides = [1, 1, 1]} : vector<3x3x128xbf16> to vector<1x1x128xbf16>
      %82 = vector.shape_cast %81 : vector<1x1x128xbf16> to vector<128xbf16>
      %83 = vector.shape_cast %82 : vector<128xbf16> to vector<1x1x128xbf16>
      %84 = vector.broadcast %83 : vector<1x1x128xbf16> to vector<4x24x128xbf16>
      %85 = arith.mulf %80, %84 : vector<4x24x128xbf16>
      %86 = vector.extract_strided_slice %34 {offsets = [1, 0, 0], sizes = [4, 24, 128], strides = [1, 1, 1]} : vector<6x24x128xbf16> to vector<4x24x128xbf16>
      %87 = vector.extract_strided_slice %24 {offsets = [1, 2, 0], sizes = [1, 1, 128], strides = [1, 1, 1]} : vector<3x3x128xbf16> to vector<1x1x128xbf16>
      %88 = vector.shape_cast %87 : vector<1x1x128xbf16> to vector<128xbf16>
      %89 = vector.shape_cast %88 : vector<128xbf16> to vector<1x1x128xbf16>
      %90 = vector.broadcast %89 : vector<1x1x128xbf16> to vector<4x24x128xbf16>
      %91 = arith.mulf %86, %90 : vector<4x24x128xbf16>
      %92 = arith.addf %85, %91 : vector<4x24x128xbf16>
      %93 = vector.extract_strided_slice %34 {offsets = [2, 0, 0], sizes = [4, 24, 128], strides = [1, 1, 1]} : vector<6x24x128xbf16> to vector<4x24x128xbf16>
      %94 = vector.extract_strided_slice %24 {offsets = [2, 2, 0], sizes = [1, 1, 128], strides = [1, 1, 1]} : vector<3x3x128xbf16> to vector<1x1x128xbf16>
      %95 = vector.shape_cast %94 : vector<1x1x128xbf16> to vector<128xbf16>
      %96 = vector.shape_cast %95 : vector<128xbf16> to vector<1x1x128xbf16>
      %97 = vector.broadcast %96 : vector<1x1x128xbf16> to vector<4x24x128xbf16>
      %98 = arith.mulf %93, %97 : vector<4x24x128xbf16>
      %99 = arith.addf %92, %98 : vector<4x24x128xbf16>
      %100 = arith.extf %99 : vector<4x24x128xbf16> to vector<4x24x128xf32>
      %101 = vector.extract_strided_slice %100 {offsets = [0, 2, 0], sizes = [4, 16, 128], strides = [1, 1, 1]} : vector<4x24x128xf32> to vector<4x16x128xf32>
      %102 = arith.addf %79, %101 : vector<4x16x128xf32>
      %103 = vector.shape_cast %102 : vector<4x16x128xf32> to vector<64x128xf32>
      %104 = arith.truncf %103 : vector<64x128xf32> to vector<64x128xbf16>
      %c0_24 = arith.constant 0 : index
      %c0_25 = arith.constant 0 : index
      %105 = vector.load %arg4[%c0_24, %c0_25] : memref<128x128xbf16, #tpu.memory_space<vmem>>, vector<128x128xbf16>
      %cst = arith.constant dense<0.000000e+00> : vector<64x128xf32>
      %106 = tpu.matmul %104, %105, %cst {dimension_numbers = #tpu.dot_dimension_numbers<[1], [0], [0], [1], [0, 0, 1, 1], [], []>} : vector<64x128xbf16>, vector<128x128xbf16>, vector<64x128xf32> -> vector<64x128xf32>
      %107 = vector.broadcast %25 : vector<1x128xf32> to vector<64x128xf32>
      %108 = arith.addf %106, %107 : vector<64x128xf32>
      %109 = vector.shape_cast %108 : vector<64x128xf32> to vector<4x16x128xf32>
      %c0_26 = arith.constant 0 : index
      %110 = arith.index_cast %28 : i32 to index
      %c0_27 = arith.constant 0 : index
      %c0_28 = arith.constant 0 : index
      %111 = vector.load %arg6[%c0_26, %110, %c0_27, %c0_28] : memref<1x8x16x128xf32, #tpu.memory_space<vmem>>, vector<1x4x16x128xf32>
      %112 = vector.shape_cast %111 : vector<1x4x16x128xf32> to vector<4x16x128xf32>
      %113 = vector.shape_cast %109 : vector<4x16x128xf32> to vector<1x4x16x128xf32>
      tpu.vector_store %arg6[%c0_26, %110, %c0_27, %c0_28], %113 {strides = array<i32>} : memref<1x8x16x128xf32, #tpu.memory_space<vmem>>, vector<1x4x16x128xf32>,
    }
    %c2_i32_20 = arith.constant 2 : i32
    return
  }
  func.func @transform_1(%arg0: i32, %arg1: i32) -> (i32, i32, i32) {
    %c0_i32 = arith.constant 0 : i32
    %c0_i32_0 = arith.constant 0 : i32
    %c0_i32_1 = arith.constant 0 : i32
    %c0_i32_2 = arith.constant 0 : i32
    return %c0_i32, %c0_i32_0, %c0_i32_1 : i32, i32, i32
  }
  func.func @transform_2(%arg0: i32, %arg1: i32) -> (i32, i32) {
    %c0_i32 = arith.constant 0 : i32
    %c0_i32_0 = arith.constant 0 : i32
    %c0_i32_1 = arith.constant 0 : i32
    return %c0_i32, %c0_i32_0 : i32, i32
  }
  func.func @transform_3(%arg0: i32, %arg1: i32) -> (i32, i32) {
    %c0_i32 = arith.constant 0 : i32
    %c0_i32_0 = arith.constant 0 : i32
    %c0_i32_1 = arith.constant 0 : i32
    return %c0_i32, %c0_i32_0 : i32, i32
  }
  func.func @transform_4(%arg0: i32, %arg1: i32) -> (i32, i32, i32, i32) {
    %c0_i32 = arith.constant 0 : i32
    %c0_i32_0 = arith.constant 0 : i32
    %c0_i32_1 = arith.constant 0 : i32
    return %arg0, %arg1, %c0_i32, %c0_i32_0 : i32, i32, i32, i32
  }
}

</mosaic_0001>

<llo_original>
// kernel: tpu_custom_call.1
$region0: #{tpu_custom_call.1}
  #allocation0 [shape = 'u32[]', space=smem, size = 0x4, offset = 0x4, fixed_abs, tag = 'smem constant byte address 0x4 - core index']
  #allocation1 [shape = 'u32[144,128]{1,0:T(1,128)}', space=vmem, size = 0x12000, scoped, tag = 'internal scratch']
  #allocation2 [shape = 'bf16[2,10,24,128]{3,2,1,0:T(8,128)(2,1)}', space=vmem, size = 0x1e000, scoped, tag = 'scratch operand']
  #allocation3 [shape = 's32[2]{0}', space=sflag, size = 0x8, scoped, tag = 'scratch operand']
  #allocation10 [shape = 's32[]', space=sflag, size = 0x4, offset = 0, fixed_abs, tag = 'sflag constant byte address 0x0 - dummy sync flag']
  #allocation11 [shape = 's32[]', space=sflag, size = 0x4, offset = 0, fixed_abs, tag = 'sflag constant byte address 0x0 - dummy sync flag']
  #allocation12 [shape = 'u32[]', space=smem, size = 0x4, offset = 0x44, fixed_abs, tag = 'smem constant byte address 0x44 - assertion arg 0']
  #allocation13 [shape = 'u32[]', space=smem, size = 0x4, offset = 0x48, fixed_abs, tag = 'smem constant byte address 0x48 - assertion arg 1']
  #allocation14 [shape = 's32[]', space=sflag, size = 0x4, offset = 0, fixed_abs, tag = 'sflag constant byte address 0x0 - dummy sync flag']
  #allocation15 [shape = 's32[]', space=sflag, size = 0x4, offset = 0, fixed_abs, tag = 'sflag constant byte address 0x0 - dummy sync flag']
  %s0 = inlined_call_operand.hbm [shape: bf16[2,18,24,128], index: 0, kind: input, shape index: {}]
  %s1 = inlined_call_operand.hbm [shape: bf16[3,3,128], index: 1, kind: input, shape index: {}]
  %s2 = inlined_call_operand.hbm [shape: bf16[128,128], index: 2, kind: input, shape index: {}]
  %s3 = inlined_call_operand.vmem [shape: f32[1,128], index: 3, kind: input, shape index: {}]
  %s4 = inlined_call_operand.hbm [shape: f32[2,16,16,128], index: 4, kind: output, shape index: {}]
  %s5 = sld [smem:[#allocation0]]
  $region76: #{tpu_custom_call.1} parent=0
    _
  %s7 = ssub.s32 1, %s5
  %s8 = scalar_select 0, %s7, %s5
  $region1: #{tpu_custom_call.1} parent=0
    #allocation4 [shape = 'u8[3072]{0}', space=vmem, size = 0xc00, scoped, tag = 'input window, operand 1, single buffered']
    #allocation5 [shape = 's32[2]{0}', space=sflag, size = 0x8, scoped, tag = 'scoped memory for tpu_custom_call.1']
    #allocation6 [shape = 's32[2]{0}', space=sflag, size = 0x8, scoped, tag = 'scoped memory for tpu_custom_call.1']
    #allocation7 [shape = 'u8[32768]{0}', space=vmem, size = 0x8000, scoped, tag = 'input window, operand 2, single buffered']
    #allocation8 [shape = 's32[1]{0}', space=sflag, size = 0x4, scoped, tag = 'scoped memory for tpu_custom_call.1']
    #allocation9 [shape = 'u8[131072]{0}', space=vmem, size = 0x20000, scoped, tag = 'output window, operand 0']
    %9 = vsyncpa [#allocation5], 0
    %10 = vsyncpa [#allocation8], 0
    %11 = vsyncpa [#allocation6], 0
    %s12 = scalar_lea.sflag [#allocation6], 1
    %13 = vsyncpa %s12, 0
    loop: start=0, step=1, limit=6
    $region2: #{tpu_custom_call.1} parent=1 // loop_pre_header
      _
    $region3: #{tpu_custom_call.1} parent=1 // loop_header
      %s15 = sphi 0, %s19
      %p16 = scmp.ge.s32.totalorder %s15, 6
      %s22 = sphi 0, %s34
      %s23 = sphi 0, %s30
      %s24 = sphi 0, %s22
      %s25 = sphi 0, %s23
      %s26 = sphi 0, %s24
      %s27 = sphi 0, %s25
      %s35 = sphi 0, %s35
      %s37 = sphi 0, %s35
      %s38 = sphi 0, %s37
      %s52 = sphi 0, %s38
      %s56 = sphi 0, %s56
      %s58 = sphi 0, %s56
      %s59 = sphi 0, %s58
      %s73 = sphi 0, %s59
      %s77 = sphi 0, %s77
      %s79 = sphi 0, %s77
      %s80 = sphi 0, %s79
      %s94 = sphi 0, %s80
      %s102 = sphi 0, %s104
      %s105 = sphi 0, %s102
      %s106 = sphi 0, %s105
      %s122 = sphi 0, %s106
    $region4: #{tpu_custom_call.1} parent=1 // loop_header_branch
      %18 = sbr.rel (%p16) target = $region8
    $region5: #{tpu_custom_call.1} parent=1 // loop_body
      %s20 = ssub.s32 %s15, 1
      %s21 = ssub.s32 %s15, 2
      %s28 = sadd.s32 1, %s23
      %p29 = scmp.ge.s32.totalorder %s28, 2
      %s30 = scalar_select %p29, 0, %s28
      %s31 = sadd.s32 1, %s22
      %s32 = scalar_select %p29, %s31, %s22
      %p33 = scmp.ge.s32.totalorder %s32, 2
      %s34 = scalar_select %p33, 0, %s32
      %s36 = sadd.s32 %s35, 1
      %p39 = scmp.eq.s32.totalorder %s15, 3
      %p40 = scmp.ne.s32.totalorder %s35, %s37
      %p41 = scmp.eq.s32.totalorder %s15, 0
      %p42 = por %p40, %p41
      %p43 = scmp.ne.s32.totalorder %s35, %s37
      %p44 = scmp.eq.s32.totalorder %s20, 3
      %p45 = por %p43, %p44
      %p46 = scmp.ne.s32.totalorder %s37, %s38
      %p47 = scmp.eq.s32.totalorder %s20, 0
      %p48 = por %p46, %p47
      %p49 = scmp.ne.s32.totalorder %s37, %s38
      %p50 = scmp.eq.s32.totalorder %s21, 3
      %p51 = por %p49, %p50
      %p53 = scmp.ne.s32.totalorder %s38, %s52
      %p54 = scmp.eq.s32.totalorder %s21, 0
      %p55 = por %p53, %p54
      %s57 = sadd.s32 %s56, 1
      %p60 = scmp.eq.s32.totalorder %s15, 3
      %p61 = scmp.ne.s32.totalorder %s56, %s58
      %p62 = scmp.eq.s32.totalorder %s15, 0
      %p63 = por %p61, %p62
      %p64 = scmp.ne.s32.totalorder %s56, %s58
      %p65 = scmp.eq.s32.totalorder %s20, 3
      %p66 = por %p64, %p65
      %p67 = scmp.ne.s32.totalorder %s58, %s59
      %p68 = scmp.eq.s32.totalorder %s20, 0
      %p69 = por %p67, %p68
      %p70 = scmp.ne.s32.totalorder %s58, %s59
      %p71 = scmp.eq.s32.totalorder %s21, 3
      %p72 = por %p70, %p71
      %p74 = scmp.ne.s32.totalorder %s59, %s73
      %p75 = scmp.eq.s32.totalorder %s21, 0
      %p76 = por %p74, %p75
      %s78 = sadd.s32 %s77, 1
      %p81 = scmp.eq.s32.totalorder %s15, 3
      %p82 = scmp.ne.s32.totalorder %s77, %s79
      %p83 = scmp.eq.s32.totalorder %s15, 0
      %p84 = por %p82, %p83
      %p85 = scmp.ne.s32.totalorder %s77, %s79
      %p86 = scmp.eq.s32.totalorder %s20, 3
      %p87 = por %p85, %p86
      %p88 = scmp.ne.s32.totalorder %s79, %s80
      %p89 = scmp.eq.s32.totalorder %s20, 0
      %p90 = por %p88, %p89
      %p91 = scmp.ne.s32.totalorder %s79, %s80
      %p92 = scmp.eq.s32.totalorder %s21, 3
      %p93 = por %p91, %p92
      %p95 = scmp.ne.s32.totalorder %s80, %s94
      %p96 = scmp.eq.s32.totalorder %s21, 0
      %p97 = por %p95, %p96
      %s98 = ssub.s32 %s22, %s34
      %s99 = ssub.s32 %s23, %s30
      %s100 = sor.u32 %s98, %s99
      %p101 = scmp.eq.s32.totalorder %s100, 0
      %s103 = sadd.s32 %s102, 1
      %s104 = scalar_select %p101, %s102, %s103
      %p107 = pneg %p101
      %p108 = scmp.eq.s32.totalorder %s15, 3
      %p109 = por %p107, %p108
      %p110 = scmp.ne.s32.totalorder %s102, %s105
      %p111 = scmp.eq.s32.totalorder %s15, 0
      %p112 = por %p110, %p111
      %p113 = scmp.ne.s32.totalorder %s102, %s105
      %p114 = scmp.eq.s32.totalorder %s20, 3
      %p115 = por %p113, %p114
      %p116 = scmp.ne.s32.totalorder %s105, %s106
      %p117 = scmp.eq.s32.totalorder %s20, 0
      %p118 = por %p116, %p117
      %p119 = scmp.ne.s32.totalorder %s105, %s106
      %p120 = scmp.eq.s32.totalorder %s21, 3
      %p121 = por %p119, %p120
      %p123 = scmp.ne.s32.totalorder %s106, %s122
      %p124 = scmp.eq.s32.totalorder %s21, 0
      %p125 = por %p123, %p124
      %p126 = scmp.le.s32.totalorder 1, %s15
      %p127 = scmp.lt.s32.totalorder %s15, 5
      %p128 = pnand %p126, %p127
      %p129 = pneg %p128
      // Predicated region
      $region9: #{tpu_custom_call.1} parent=5 // pred_check
        _
      $region10: #{tpu_custom_call.1} parent=5 // pred_check_branch
        %131 = sbr.rel (%p128) target = $region12
      $region11: #{tpu_custom_call.1} parent=5 // pred_region
        %s132 = ssub.s32 %s15, 1
        // Predicated region
        $region13: #{tpu_custom_call.1} parent=11 // pred_check
          %p133 = pneg %p48
        $region14: #{tpu_custom_call.1} parent=11 // pred_check_branch
          %135 = sbr.rel (%p133) target = $region16
        $region15: #{tpu_custom_call.1} parent=11 // pred_region
          %s137 = ssub.s32 96, 96
          %138 = vsyncadd [#allocation5], %s137
          %s139 = sshll.u32 [#allocation4], 4
          %s140 = int_to_ptr.vmem [resolvable:$true] %s139
          %145 = dma.hbm_to_vmem [thread:$0]  %s1, 96, %s140, [#allocation5], 32, 32, 2
        $region16: #{tpu_custom_call.1} parent=11 // pred_fallthru
          _
        // Predicated region
        $region17: #{tpu_custom_call.1} parent=11 // pred_check
          %p146 = pneg %p69
        $region18: #{tpu_custom_call.1} parent=11 // pred_check_branch
          %148 = sbr.rel (%p146) target = $region20
        $region19: #{tpu_custom_call.1} parent=11 // pred_region
          %s150 = ssub.s32 1024, 1024
          %151 = vsyncadd [#allocation8], %s150
          %s152 = sshll.u32 [#allocation7], 4
          %s153 = int_to_ptr.vmem [resolvable:$true] %s152
          %158 = dma.hbm_to_vmem [thread:$0]  %s2, 1024, %s153, [#allocation8], 64, 64, 4
        $region20: #{tpu_custom_call.1} parent=11 // pred_fallthru
          _
        // Predicated region
        $region21: #{tpu_custom_call.1} parent=11 // pred_check
          %p159 = pneg %p90
        $region22: #{tpu_custom_call.1} parent=11 // pred_check_branch
          %161 = sbr.rel (%p159) target = $region24
        $region23: #{tpu_custom_call.1} parent=11 // pred_region
          _
        $region24: #{tpu_custom_call.1} parent=11 // pred_fallthru
          _
      $region12: #{tpu_custom_call.1} parent=5 // pred_fallthru
        _
      %p162 = scmp.lt.s32.totalorder %s15, 4
      // Predicated region
      $region25: #{tpu_custom_call.1} parent=5 // pred_check
        %p163 = pneg %p162
      $region26: #{tpu_custom_call.1} parent=5 // pred_check_branch
        %165 = sbr.rel (%p163) target = $region28
      $region27: #{tpu_custom_call.1} parent=5 // pred_region
        _
      $region28: #{tpu_custom_call.1} parent=5 // pred_fallthru
        _
      %p166 = scmp.le.s32.totalorder 1, %s15
      %p167 = scmp.lt.s32.totalorder %s15, 5
      %p168 = pnand %p166, %p167
      %p169 = pneg %p168
      // Predicated region
      $region29: #{tpu_custom_call.1} parent=5 // pred_check
        _
      $region30: #{tpu_custom_call.1} parent=5 // pred_check_branch
        %171 = sbr.rel (%p168) target = $region32
      $region31: #{tpu_custom_call.1} parent=5 // pred_region
        %s172 = ssub.s32 %s15, 1
        // Predicated region
        $region33: #{tpu_custom_call.1} parent=31 // pred_check
          %p173 = pneg %p48
        $region34: #{tpu_custom_call.1} parent=31 // pred_check_branch
          %175 = sbr.rel (%p173) target = $region36
        $region35: #{tpu_custom_call.1} parent=31 // pred_region
          %176 = dma.done [#allocation5], 96
        $region36: #{tpu_custom_call.1} parent=31 // pred_fallthru
          _
        // Predicated region
        $region37: #{tpu_custom_call.1} parent=31 // pred_check
          %p177 = pneg %p69
        $region38: #{tpu_custom_call.1} parent=31 // pred_check_branch
          %179 = sbr.rel (%p177) target = $region40
        $region39: #{tpu_custom_call.1} parent=31 // pred_region
          %180 = dma.done [#allocation8], 1024
        $region40: #{tpu_custom_call.1} parent=31 // pred_fallthru
          _
        %p181 = pneg %p48
        %p182 = pneg %p45
        %p183 = pneg %p69
        %p184 = pneg %p66
        %p185 = pneg %p90
        %p186 = pneg %p87
        %p187 = pneg %p118
        %p188 = pneg %p115
        %s189 = sand.u32 %s105, 1
        %s190 = scalar_lea.sflag [#allocation6], %s189
        %s191 = sand.u32 %s105, 1
        %s192 = smul.addr %s191, 128
        %s193 = scalar_lea.vmem [#allocation9], %s192
        %s194 = smul.u32 8, %s25
        %p196 = scmp.lt.s32.totalorder %s25, 0
        %s197 = ssub.s32 0, %s25
        %s198 = scalar_select %p196, %s197, %s25
        %s199 = sand.u32 %s198, 1
        %s200 = ssub.s32 0, %s199
        %s201 = scalar_select %p196, %s200, %s199
        %p202 = scmp.ne.s32.totalorder %s201, 0
        %p203 = scmp.lt.s32.totalorder %s201, 0
        %p204 = pnand %p203, %p202
        %p205 = pneg %p204
        %s206 = sadd.s32 %s201, 2
        %s207 = scalar_select %p205, %s206, %s201
        %p208 = scmp.eq.s32.totalorder %s25, 0
        // Predicated region
        $region41: #{tpu_custom_call.1} parent=31 // pred_check
          %p209 = pneg %p208
        $region42: #{tpu_custom_call.1} parent=31 // pred_check_branch
          %211 = sbr.rel (%p209) target = $region44
        $region43: #{tpu_custom_call.1} parent=31 // pred_region
          %s212 = smul.u32 %s24, 54
          %s213 = smul.addr %s212, 64
          %s214 = scalar_lea.hbm %s0, %s213
          %s215 = smul.u32 %s207, 30
          %s216 = smul.addr %s215, 4
          %s217 = scalar_lea.vmem [#allocation2], %s216
          %s218 = scalar_lea.sflag [#allocation3], %s207
          // Predicated region
          $region45: #{tpu_custom_call.1} parent=43 // pred_check
            _
          $region46: #{tpu_custom_call.1} parent=43 // pred_check_branch
            %220 = sbr.rel target = $region48
          $region47: #{tpu_custom_call.1} parent=43 // pred_region
            %221 = sst [smem:[#allocation12]] [#allocation11]
            %222 = sst [smem:[#allocation13]] [#allocation10]
          $region48: #{tpu_custom_call.1} parent=43 // pred_fallthru
            _
          %224 = shalt.err (0)
          %s226 = sshll.u32 %s217, 4
          %s227 = int_to_ptr.vmem [resolvable:$true] %s226
          %229 = dma.hbm_to_vmem [thread:$0]  %s214, 1920, %s227, %s218
        $region44: #{tpu_custom_call.1} parent=31 // pred_fallthru
          _
        %s230 = scalar_lea.sflag [#allocation3], %s207
        %s231 = smul.u32 4, 10
        %s232 = smul.u32 %s231, 3
        %s233 = smul.u32 %s232, 1
        %s234 = sshll.u32 %s233, 4
        %235 = dma.done %s230, %s234
        %s236 = sadd.s32 %s25, 1
        %p237 = scmp.lt.s32.totalorder %s236, 2
        // Predicated region
        $region49: #{tpu_custom_call.1} parent=31 // pred_check
          %p238 = pneg %p237
        $region50: #{tpu_custom_call.1} parent=31 // pred_check_branch
          %240 = sbr.rel (%p238) target = $region52
        $region51: #{tpu_custom_call.1} parent=31 // pred_region
          %s241 = ssub.s32 1, %s207
          %s242 = smul.u32 %s236, 8
          %s243 = smul.u32 %s242, 3
          %s244 = smul.u32 %s24, 54
          %s245 = sadd.s32 %s243, %s244
          %s246 = smul.addr %s245, 64
          %s247 = scalar_lea.hbm %s0, %s246
          %s248 = smul.u32 %s241, 30
          %s249 = smul.addr %s248, 4
          %s250 = scalar_lea.vmem [#allocation2], %s249
          %s251 = scalar_lea.sflag [#allocation3], %s241
          // Predicated region
          $region53: #{tpu_custom_call.1} parent=51 // pred_check
            _
          $region54: #{tpu_custom_call.1} parent=51 // pred_check_branch
            %253 = sbr.rel target = $region56
          $region55: #{tpu_custom_call.1} parent=51 // pred_region
            %254 = sst [smem:[#allocation12]] [#allocation15]
            %255 = sst [smem:[#allocation13]] [#allocation14]
          $region56: #{tpu_custom_call.1} parent=51 // pred_fallthru
            _
          %257 = shalt.err (0)
          %s259 = sshll.u32 %s250, 4
          %s260 = int_to_ptr.vmem [resolvable:$true] %s259
          %262 = dma.hbm_to_vmem [thread:$0]  %s247, 1920, %s260, %s251
        $region52: #{tpu_custom_call.1} parent=31 // pred_fallthru
          _
        %v263 = vld [vmem:[#allocation4] sm:$0x3]
        %v264 = vld [vmem:[#allocation4 + $0x2] sm:$0x3]
        %v265 = vld [vmem:[#allocation4 + $0x4] sm:$0x3]
        %v266 = vld [vmem:[%s3] sm:$0x1]
        loop: start=0, step=1, limit=2
        $region57: #{tpu_custom_call.1} parent=31 // loop_pre_header
          _
        $region58: #{tpu_custom_call.1} parent=31 // loop_header
          %s268 = sphi 0, %s272
          %p269 = scmp.ge.s32.totalorder %s268, 2
        $region59: #{tpu_custom_call.1} parent=31 // loop_header_branch
          %271 = sbr.rel (%p269) target = $region63
        $region60: #{tpu_custom_call.1} parent=31 // loop_body
          %s273 = smul.u32 %s268, 4
          %s274 = smul.u32 %s273, 3
          %s275 = smul.u32 %s207, 30
          %s276 = sadd.s32 %s274, %s275
          %s277 = smul.addr %s276, 4
          %s278 = scalar_lea.vmem [#allocation2], %s277
          %v279 = vld [vmem:[%s278] sm:$0xf]
          %v280 = vld [vmem:[%s278 + $0x4] sm:$0xf]
          %v281 = vld [vmem:[%s278 + $0x8] sm:$0xf]
          %v282 = vld [vmem:[%s278 + $0xc] sm:$0xf]
          %v283 = vld [vmem:[%s278 + $0x10] sm:$0xf]
          %v284 = vld [vmem:[%s278 + $0x14] sm:$0xf]
          %v285 = vld [vmem:[%s278 + $0x18] sm:$0xf]
          %v286 = vld [vmem:[%s278 + $0x1c] sm:$0xf]
          %v287 = vld [vmem:[%s278 + $0x20] sm:$0xf]
          %v288 = vld [vmem:[%s278 + $0x24] sm:$0xf]
          %v289 = vld [vmem:[%s278 + $0x28] sm:$0xf]
          %v290 = vld [vmem:[%s278 + $0x2c] sm:$0xf]
          %v291 = vld [vmem:[%s278 + $0x30] sm:$0xf]
          %v292 = vld [vmem:[%s278 + $0x34] sm:$0xf]
          %v293 = vld [vmem:[%s278 + $0x38] sm:$0xf]
          %v294 = vld [vmem:[%s278 + $0x3c] sm:$0xf]
          %v295 = vld [vmem:[%s278 + $0x40] sm:$0xf]
          %v296 = vld [vmem:[%s278 + $0x44] sm:$0xf]
          %v298 = vpack.i.b16 %v263, %v263
          %v300 = vlaneseq
          %v301 = vshrl.u32 %v300, 7
          %v302 = vsub.s32 0, %v301
          %v303 = vrot.slane %v298, %v302
          %v305 = vunpack.c.l.b16 %v303
          %v306 = vpack.c.b16 %v305, %v305
          %v308 = vmul.bf16 %v279, %v306
          %v309 = vmul.bf16 %v280, %v306
          %v310 = vmul.bf16 %v282, %v306
          %v311 = vmul.bf16 %v283, %v306
          %v312 = vmul.bf16 %v285, %v306
          %v313 = vmul.bf16 %v286, %v306
          %v314 = vmul.bf16 %v288, %v306
          %v315 = vmul.bf16 %v289, %v306
          %v317 = vpack.i.b16 %v264, %v264
          %v319 = vlaneseq
          %v320 = vshrl.u32 %v319, 7
          %v321 = vsub.s32 0, %v320
          %v322 = vrot.slane %v317, %v321
          %v324 = vunpack.c.l.b16 %v322
          %v325 = vpack.c.b16 %v324, %v324
          %v327 = vmul.bf16 %v282, %v325
          %v328 = vmul.bf16 %v283, %v325
          %v329 = vmul.bf16 %v285, %v325
          %v330 = vmul.bf16 %v286, %v325
          %v331 = vmul.bf16 %v288, %v325
          %v332 = vmul.bf16 %v289, %v325
          %v333 = vmul.bf16 %v291, %v325
          %v334 = vmul.bf16 %v292, %v325
          %v335 = vadd.bf16 %v308, %v327
          %v336 = vadd.bf16 %v309, %v328
          %v337 = vadd.bf16 %v310, %v329
          %v338 = vadd.bf16 %v311, %v330
          %v339 = vadd.bf16 %v312, %v331
          %v340 = vadd.bf16 %v313, %v332
          %v341 = vadd.bf16 %v314, %v333
          %v342 = vadd.bf16 %v315, %v334
          %v344 = vpack.i.b16 %v265, %v265
          %v346 = vlaneseq
          %v347 = vshrl.u32 %v346, 7
          %v348 = vsub.s32 0, %v347
          %v349 = vrot.slane %v344, %v348
          %v351 = vunpack.c.l.b16 %v349
          %v352 = vpack.c.b16 %v351, %v351
          %v354 = vmul.bf16 %v285, %v352
          %v355 = vmul.bf16 %v286, %v352
          %v356 = vmul.bf16 %v288, %v352
          %v357 = vmul.bf16 %v289, %v352
          %v358 = vmul.bf16 %v291, %v352
          %v359 = vmul.bf16 %v292, %v352
          %v360 = vmul.bf16 %v294, %v352
          %v361 = vmul.bf16 %v295, %v352
          %v362 = vadd.bf16 %v335, %v354
          %v363 = vadd.bf16 %v336, %v355
          %v364 = vadd.bf16 %v337, %v356
          %v365 = vadd.bf16 %v338, %v357
          %v366 = vadd.bf16 %v339, %v358
          %v367 = vadd.bf16 %v340, %v359
          %v368 = vadd.bf16 %v341, %v360
          %v369 = vadd.bf16 %v342, %v361
          %v370 = vunpack.c.l.bf16 %v362
          %v371 = vunpack.c.l.bf16 %v363
          %v372 = vunpack.c.l.bf16 %v364
          %v373 = vunpack.c.l.bf16 %v365
          %v374 = vunpack.c.l.bf16 %v366
          %v375 = vunpack.c.l.bf16 %v367
          %v376 = vunpack.c.l.bf16 %v368
          %v377 = vunpack.c.l.bf16 %v369
          %v378 = vshrl.u32 %v263, 16
          %v379 = vpack.i.b16 %v378, %v378
          %v381 = vlaneseq
          %v382 = vshrl.u32 %v381, 7
          %v383 = vsub.s32 0, %v382
          %v384 = vrot.slane %v379, %v383
          %v386 = vunpack.c.l.b16 %v384
          %v387 = vpack.c.b16 %v386, %v386
          %v389 = vmul.bf16 %v279, %v387
          %v390 = vmul.bf16 %v280, %v387
          %v391 = vmul.bf16 %v281, %v387
          %v392 = vmul.bf16 %v282, %v387
          %v393 = vmul.bf16 %v283, %v387
          %v394 = vmul.bf16 %v284, %v387
          %v395 = vmul.bf16 %v285, %v387
          %v396 = vmul.bf16 %v286, %v387
          %v397 = vmul.bf16 %v287, %v387
          %v398 = vmul.bf16 %v288, %v387
          %v399 = vmul.bf16 %v289, %v387
          %v400 = vmul.bf16 %v290, %v387
          %v401 = vshrl.u32 %v264, 16
          %v402 = vpack.i.b16 %v401, %v401
          %v404 = vlaneseq
          %v405 = vshrl.u32 %v404, 7
          %v406 = vsub.s32 0, %v405
          %v407 = vrot.slane %v402, %v406
          %v409 = vunpack.c.l.b16 %v407
          %v410 = vpack.c.b16 %v409, %v409
          %v412 = vmul.bf16 %v282, %v410
          %v413 = vmul.bf16 %v283, %v410
          %v414 = vmul.bf16 %v284, %v410
          %v415 = vmul.bf16 %v285, %v410
          %v416 = vmul.bf16 %v286, %v410
          %v417 = vmul.bf16 %v287, %v410
          %v418 = vmul.bf16 %v288, %v410
          %v419 = vmul.bf16 %v289, %v410
          %v420 = vmul.bf16 %v290, %v410
          %v421 = vmul.bf16 %v291, %v410
          %v422 = vmul.bf16 %v292, %v410
          %v423 = vmul.bf16 %v293, %v410
          %v424 = vadd.bf16 %v389, %v412
          %v425 = vadd.bf16 %v390, %v413
          %v426 = vadd.bf16 %v391, %v414
          %v427 = vadd.bf16 %v392, %v415
          %v428 = vadd.bf16 %v393, %v416
          %v429 = vadd.bf16 %v394, %v417
          %v430 = vadd.bf16 %v395, %v418
          %v431 = vadd.bf16 %v396, %v419
          %v432 = vadd.bf16 %v397, %v420
          %v433 = vadd.bf16 %v398, %v421
          %v434 = vadd.bf16 %v399, %v422
          %v435 = vadd.bf16 %v400, %v423
          %v436 = vshrl.u32 %v265, 16
          %v437 = vpack.i.b16 %v436, %v436
          %v439 = vlaneseq
          %v440 = vshrl.u32 %v439, 7
          %v441 = vsub.s32 0, %v440
          %v442 = vrot.slane %v437, %v441
          %v444 = vunpack.c.l.b16 %v442
          %v445 = vpack.c.b16 %v444, %v444
          %v447 = vmul.bf16 %v285, %v445
          %v448 = vmul.bf16 %v286, %v445
          %v449 = vmul.bf16 %v287, %v445
          %v450 = vmul.bf16 %v288, %v445
          %v451 = vmul.bf16 %v289, %v445
          %v452 = vmul.bf16 %v290, %v445
          %v453 = vmul.bf16 %v291, %v445
          %v454 = vmul.bf16 %v292, %v445
          %v455 = vmul.bf16 %v293, %v445
          %v456 = vmul.bf16 %v294, %v445
          %v457 = vmul.bf16 %v295, %v445
          %v458 = vmul.bf16 %v296, %v445
          %v459 = vadd.bf16 %v424, %v447
          %v460 = vadd.bf16 %v425, %v448
          %v461 = vadd.bf16 %v426, %v449
          %v462 = vadd.bf16 %v427, %v450
          %v463 = vadd.bf16 %v428, %v451
          %v464 = vadd.bf16 %v429, %v452
          %v465 = vadd.bf16 %v430, %v453
          %v466 = vadd.bf16 %v431, %v454
          %v467 = vadd.bf16 %v432, %v455
          %v468 = vadd.bf16 %v433, %v456
          %v469 = vadd.bf16 %v434, %v457
          %v470 = vadd.bf16 %v435, %v458
          %v471 = vunpack.c.l.bf16 %v459
          %v472 = vunpack.c.l.bf16 %v460
          %v473 = vunpack.c.l.bf16 %v461
          %v474 = vunpack.c.l.bf16 %v462
          %v475 = vunpack.c.l.bf16 %v463
          %v476 = vunpack.c.l.bf16 %v464
          %v477 = vunpack.c.l.bf16 %v465
          %v478 = vunpack.c.l.bf16 %v466
          %v479 = vunpack.c.l.bf16 %v467
          %v480 = vunpack.c.l.bf16 %v468
          %v481 = vunpack.c.l.bf16 %v469
          %v482 = vunpack.c.l.bf16 %v470
          %vm495 = vcmask 1046528
          %v496 = vrot.slane %v471, 1
          %v497 = vrot.slane %v472, 1
          %v498 = vsel %vm495, %v496, %v497
          %v499 = vrot.slane %v473, 1
          %v500 = vsel %vm495, %v497, %v499
          %v501 = vrot.slane %v474, 1
          %v502 = vrot.slane %v475, 1
          %v503 = vsel %vm495, %v501, %v502
          %v504 = vrot.slane %v476, 1
          %v505 = vsel %vm495, %v502, %v504
          %v506 = vrot.slane %v477, 1
          %v507 = vrot.slane %v478, 1
          %v508 = vsel %vm495, %v506, %v507
          %v509 = vrot.slane %v479, 1
          %v510 = vsel %vm495, %v507, %v509
          %v511 = vrot.slane %v480, 1
          %v512 = vrot.slane %v481, 1
          %v513 = vsel %vm495, %v511, %v512
          %v514 = vrot.slane %v482, 1
          %v515 = vsel %vm495, %v512, %v514
          %v524 = vadd.f32 %v370, %v498
          %v525 = vadd.f32 %v371, %v500
          %v526 = vadd.f32 %v372, %v503
          %v527 = vadd.f32 %v373, %v505
          %v528 = vadd.f32 %v374, %v508
          %v529 = vadd.f32 %v375, %v510
          %v530 = vadd.f32 %v376, %v513
          %v531 = vadd.f32 %v377, %v515
          %v532 = vlaneseq
          %v533 = vshrl.u32 %v532, 7
          %v534 = vsub.s32 1, %v533
          %v535 = vrot.slane %v298, %v534
          %v537 = vunpack.c.l.b16 %v535
          %v538 = vpack.c.b16 %v537, %v537
          %v540 = vmul.bf16 %v279, %v538
          %v541 = vmul.bf16 %v280, %v538
          %v542 = vmul.bf16 %v281, %v538
          %v543 = vmul.bf16 %v282, %v538
          %v544 = vmul.bf16 %v283, %v538
          %v545 = vmul.bf16 %v284, %v538
          %v546 = vmul.bf16 %v285, %v538
          %v547 = vmul.bf16 %v286, %v538
          %v548 = vmul.bf16 %v287, %v538
          %v549 = vmul.bf16 %v288, %v538
          %v550 = vmul.bf16 %v289, %v538
          %v551 = vmul.bf16 %v290, %v538
          %v552 = vlaneseq
          %v553 = vshrl.u32 %v552, 7
          %v554 = vsub.s32 1, %v553
          %v555 = vrot.slane %v317, %v554
          %v557 = vunpack.c.l.b16 %v555
          %v558 = vpack.c.b16 %v557, %v557
          %v560 = vmul.bf16 %v282, %v558
          %v561 = vmul.bf16 %v283, %v558
          %v562 = vmul.bf16 %v284, %v558
          %v563 = vmul.bf16 %v285, %v558
          %v564 = vmul.bf16 %v286, %v558
          %v565 = vmul.bf16 %v287, %v558
          %v566 = vmul.bf16 %v288, %v558
          %v567 = vmul.bf16 %v289, %v558
          %v568 = vmul.bf16 %v290, %v558
          %v569 = vmul.bf16 %v291, %v558
          %v570 = vmul.bf16 %v292, %v558
          %v571 = vmul.bf16 %v293, %v558
          %v572 = vadd.bf16 %v540, %v560
          %v573 = vadd.bf16 %v541, %v561
          %v574 = vadd.bf16 %v542, %v562
          %v575 = vadd.bf16 %v543, %v563
          %v576 = vadd.bf16 %v544, %v564
          %v577 = vadd.bf16 %v545, %v565
          %v578 = vadd.bf16 %v546, %v566
          %v579 = vadd.bf16 %v547, %v567
          %v580 = vadd.bf16 %v548, %v568
          %v581 = vadd.bf16 %v549, %v569
          %v582 = vadd.bf16 %v550, %v570
          %v583 = vadd.bf16 %v551, %v571
          %v584 = vlaneseq
          %v585 = vshrl.u32 %v584, 7
          %v586 = vsub.s32 1, %v585
          %v587 = vrot.slane %v344, %v586
          %v589 = vunpack.c.l.b16 %v587
          %v590 = vpack.c.b16 %v589, %v589
          %v592 = vmul.bf16 %v285, %v590
          %v593 = vmul.bf16 %v286, %v590
          %v594 = vmul.bf16 %v287, %v590
          %v595 = vmul.bf16 %v288, %v590
          %v596 = vmul.bf16 %v289, %v590
          %v597 = vmul.bf16 %v290, %v590
          %v598 = vmul.bf16 %v291, %v590
          %v599 = vmul.bf16 %v292, %v590
          %v600 = vmul.bf16 %v293, %v590
          %v601 = vmul.bf16 %v294, %v590
          %v602 = vmul.bf16 %v295, %v590
          %v603 = vmul.bf16 %v296, %v590
          %v604 = vadd.bf16 %v572, %v592
          %v605 = vadd.bf16 %v573, %v593
          %v606 = vadd.bf16 %v574, %v594
          %v607 = vadd.bf16 %v575, %v595
          %v608 = vadd.bf16 %v576, %v596
          %v609 = vadd.bf16 %v577, %v597
          %v610 = vadd.bf16 %v578, %v598
          %v611 = vadd.bf16 %v579, %v599
          %v612 = vadd.bf16 %v580, %v600
          %v613 = vadd.bf16 %v581, %v601
          %v614 = vadd.bf16 %v582, %v602
          %v615 = vadd.bf16 %v583, %v603
          %v616 = vunpack.c.l.bf16 %v604
          %v617 = vunpack.c.l.bf16 %v605
          %v618 = vunpack.c.l.bf16 %v606
          %v619 = vunpack.c.l.bf16 %v607
          %v620 = vunpack.c.l.bf16 %v608
          %v621 = vunpack.c.l.bf16 %v609
          %v622 = vunpack.c.l.bf16 %v610
          %v623 = vunpack.c.l.bf16 %v611
          %v624 = vunpack.c.l.bf16 %v612
          %v625 = vunpack.c.l.bf16 %v613
          %v626 = vunpack.c.l.bf16 %v614
          %v627 = vunpack.c.l.bf16 %v615
          %vm640 = vcmask 1045504
          %v641 = vrot.slane %v616, 2
          %v642 = vrot.slane %v617, 2
          %v643 = vsel %vm640, %v641, %v642
          %v644 = vrot.slane %v618, 2
          %v645 = vsel %vm640, %v642, %v644
          %v646 = vrot.slane %v619, 2
          %v647 = vrot.slane %v620, 2
          %v648 = vsel %vm640, %v646, %v647
          %v649 = vrot.slane %v621, 2
          %v650 = vsel %vm640, %v647, %v649
          %v651 = vrot.slane %v622, 2
          %v652 = vrot.slane %v623, 2
          %v653 = vsel %vm640, %v651, %v652
          %v654 = vrot.slane %v624, 2
          %v655 = vsel %vm640, %v652, %v654
          %v656 = vrot.slane %v625, 2
          %v657 = vrot.slane %v626, 2
          %v658 = vsel %vm640, %v656, %v657
          %v659 = vrot.slane %v627, 2
          %v660 = vsel %vm640, %v657, %v659
          %v669 = vadd.f32 %v524, %v643
          %v670 = vadd.f32 %v525, %v645
          %v671 = vadd.f32 %v526, %v648
          %v672 = vadd.f32 %v527, %v650
          %v673 = vadd.f32 %v528, %v653
          %v674 = vadd.f32 %v529, %v655
          %v675 = vadd.f32 %v530, %v658
          %v676 = vadd.f32 %v531, %v660
          %v677 = vpack.c.bf16 %v670, %v669
          %v678 = vpack.c.bf16 %v672, %v671
          %v679 = vpack.c.bf16 %v674, %v673
          %v680 = vpack.c.bf16 %v676, %v675
          %v681 = vld [vmem:[#allocation7] sm:$0xf]
          %v682 = vld [vmem:[#allocation7 + $0x4] sm:$0xf]
          %v683 = vld [vmem:[#allocation7 + $0x8] sm:$0xf]
          %v684 = vld [vmem:[#allocation7 + $0xc] sm:$0xf]
          %v685 = vld [vmem:[#allocation7 + $0x10] sm:$0xf]
          %v686 = vld [vmem:[#allocation7 + $0x14] sm:$0xf]
          %v687 = vld [vmem:[#allocation7 + $0x18] sm:$0xf]
          %v688 = vld [vmem:[#allocation7 + $0x1c] sm:$0xf]
          %v689 = vld [vmem:[#allocation7 + $0x20] sm:$0xf]
          %v690 = vld [vmem:[#allocation7 + $0x24] sm:$0xf]
          %v691 = vld [vmem:[#allocation7 + $0x28] sm:$0xf]
          %v692 = vld [vmem:[#allocation7 + $0x2c] sm:$0xf]
          %v693 = vld [vmem:[#allocation7 + $0x30] sm:$0xf]
          %v694 = vld [vmem:[#allocation7 + $0x34] sm:$0xf]
          %v695 = vld [vmem:[#allocation7 + $0x38] sm:$0xf]
          %v696 = vld [vmem:[#allocation7 + $0x3c] sm:$0xf]
          %v698 = vlaneseq
          %v699 = vshrl.u32 %v698, 7
          %v700 = vsub.s32 0, %v699
          %v701 = vrot.slane %v266, %v700
          %v719 = vunpack.c.l.b16 %v681
          %v720 = vunpack.c.l.b16 %v682
          %v721 = vunpack.c.l.b16 %v683
          %v722 = vunpack.c.l.b16 %v684
          %v723 = vunpack.c.l.b16 %v685
          %v724 = vunpack.c.l.b16 %v686
          %v725 = vunpack.c.l.b16 %v687
          %v726 = vunpack.c.l.b16 %v688
          %v727 = vunpack.c.l.b16 %v689
          %v728 = vunpack.c.l.b16 %v690
          %v729 = vunpack.c.l.b16 %v691
          %v730 = vunpack.c.l.b16 %v692
          %v731 = vunpack.c.l.b16 %v693
          %v732 = vunpack.c.l.b16 %v694
          %v733 = vunpack.c.l.b16 %v695
          %v734 = vunpack.c.l.b16 %v696
          %v735 = vpack.c.b16 %v720, %v719
          %v736 = vpack.c.b16 %v722, %v721
          %v737 = vpack.c.b16 %v724, %v723
          %v738 = vpack.c.b16 %v726, %v725
          %v739 = vpack.c.b16 %v728, %v727
          %v740 = vpack.c.b16 %v730, %v729
          %v741 = vpack.c.b16 %v732, %v731
          %v742 = vpack.c.b16 %v734, %v733
          %751 = vmatprep.subr.bf16.mxu0 0
          %752 = vmatpush1.bf16.msra.mxu0 %v735
          %753 = vmatprep.subr.bf16.mxu0 0
          %754 = vmatpush1.bf16.msra.mxu0 %v736
          %755 = vmatprep.subr.bf16.mxu0 0
          %756 = vmatpush1.bf16.msra.mxu0 %v737
          %757 = vmatprep.subr.bf16.mxu0 0
          %758 = vmatpush1.bf16.msra.mxu0 %v738
          %759 = vmatprep.subr.bf16.mxu0 0
          %760 = vmatpush1.bf16.msra.mxu0 %v739
          %761 = vmatprep.subr.bf16.mxu0 0
          %762 = vmatpush1.bf16.msra.mxu0 %v740
          %763 = vmatprep.subr.bf16.mxu0 0
          %764 = vmatpush1.bf16.msra.mxu0 %v741
          %765 = vmatprep.subr.bf16.mxu0 0
          %766 = vmatpush1.bf16.msra.mxu0 %v742
          %767 = vmatprep.subr.bf16.mxu0 0
          %768 = vmatpush1.bf16.msra.mxu0 0
          %769 = vmatprep.subr.bf16.mxu0 0
          %770 = vmatpush1.bf16.msra.mxu0 0
          %771 = vmatprep.subr.bf16.mxu0 0
          %772 = vmatpush1.bf16.msra.mxu0 0
          %773 = vmatprep.subr.bf16.mxu0 0
          %774 = vmatpush1.bf16.msra.mxu0 0
          %775 = vmatprep.subr.bf16.mxu0 0
          %776 = vmatpush1.bf16.msra.mxu0 0
          %777 = vmatprep.subr.bf16.mxu0 0
          %778 = vmatpush1.bf16.msra.mxu0 0
          %779 = vmatprep.subr.bf16.mxu0 0
          %780 = vmatpush1.bf16.msra.mxu0 0
          %781 = vmatprep.subr.bf16.mxu0 0
          %782 = vmatpush1.bf16.msra.mxu0 0
          %783 = vmatprep.mubr.bf16.mxu0 0
          %784 = vmatmul.mubr.bf16.gmra.mrb[0].mxu0 %v677
          %v785 = vpop.f32.mrb[0].mxu0
          %v786 = vadd.f32 %v701, %v785
          %v787 = vpop.f32.mrb[0].mxu0
          %v788 = vpop.f32.mrb[0].mxu0
          %v789 = vadd.f32 %v701, %v788
          %v790 = vpop.f32.mrb[0].mxu0
          %791 = vmatprep.mubr.bf16.mxu0 0
          %792 = vmatmul.mubr.bf16.gmra.mrb[0].mxu0 %v678
          %v793 = vpop.f32.mrb[0].mxu0
          %v794 = vadd.f32 %v701, %v793
          %v795 = vpop.f32.mrb[0].mxu0
          %v796 = vpop.f32.mrb[0].mxu0
          %v797 = vadd.f32 %v701, %v796
          %v798 = vpop.f32.mrb[0].mxu0
          %799 = vmatprep.mubr.bf16.mxu0 0
          %800 = vmatmul.mubr.bf16.gmra.mrb[0].mxu0 %v679
          %v801 = vpop.f32.mrb[0].mxu0
          %v802 = vadd.f32 %v701, %v801
          %v803 = vpop.f32.mrb[0].mxu0
          %v804 = vpop.f32.mrb[0].mxu0
          %v805 = vadd.f32 %v701, %v804
          %v806 = vpop.f32.mrb[0].mxu0
          %807 = vmatprep.mubr.bf16.mxu0 0
          %808 = vmatmul.mubr.bf16.gmra.mrb[0].mxu0 %v680
          %v809 = vpop.f32.mrb[0].mxu0
          %v810 = vadd.f32 %v701, %v809
          %v811 = vpop.f32.mrb[0].mxu0
          %v812 = vpop.f32.mrb[0].mxu0
          %v813 = vadd.f32 %v701, %v812
          %v814 = vpop.f32.mrb[0].mxu0
          %815 = vdwg.mxu0
          %s816 = smul.u32 %s273, 16
          %s817 = scalar_lea.vmem %s193, %s816 [#allocation9]
          %818 = vst [vmem:[%s817] sm:$0xff] %v786
          %819 = vst [vmem:[%s817 + $0x8] sm:$0xff] %v789
          %820 = vst [vmem:[%s817 + $0x10] sm:$0xff] %v794
          %821 = vst [vmem:[%s817 + $0x18] sm:$0xff] %v797
          %822 = vst [vmem:[%s817 + $0x20] sm:$0xff] %v802
          %823 = vst [vmem:[%s817 + $0x28] sm:$0xff] %v805
          %824 = vst [vmem:[%s817 + $0x30] sm:$0xff] %v810
          %825 = vst [vmem:[%s817 + $0x38] sm:$0xff] %v813
        $region61: #{tpu_custom_call.1} parent=31 // loop_footer
          %s272 = sadd.s32 1, %s268
        $region62: #{tpu_custom_call.1} parent=31 // loop_footer_branch
          %267 = sbr.rel target = $region58
        $region63: #{tpu_custom_call.1} parent=31 // loop_exit
          _
        %s826 = sand.u32 %s105, 1
        %s827 = scalar_lea.sflag [#allocation6], %s826
        %s828 = sand.u32 %s105, 1
        %s829 = smul.addr %s828, 128
        %s830 = scalar_lea.vmem [#allocation9], %s829
        // Predicated region
        $region64: #{tpu_custom_call.1} parent=31 // pred_check
          %p831 = pneg %p115
        $region65: #{tpu_custom_call.1} parent=31 // pred_check_branch
          %833 = sbr.rel (%p831) target = $region67
        $region66: #{tpu_custom_call.1} parent=31 // pred_region
          %s834 = smul.u32 8, %s25
          %s836 = ssub.s32 2048, 2048
          %837 = vsyncadd %s827, %s836
          %s838 = smul.addr %s834, 2
          %s839 = smul.addr %s24, 32
          %s840 = sadd.s32 %s838, %s839
          %s841 = smul.addr %s840, 128
          %s842 = scalar_lea.hbm %s4, %s841
          %s843 = sshll.u32 %s830, 4
          %s844 = int_to_ptr.vmem [resolvable:$true] %s843
          %849 = dma.vmem_to_hbm [thread:$0]  %s844, 2048, %s842, %s827, 128, 128, 8
        $region67: #{tpu_custom_call.1} parent=31 // pred_fallthru
          _
      $region32: #{tpu_custom_call.1} parent=5 // pred_fallthru
        _
      %p850 = scmp.le.s32.totalorder 2, %s15
      // Predicated region
      $region68: #{tpu_custom_call.1} parent=5 // pred_check
        %p851 = pneg %p850
      $region69: #{tpu_custom_call.1} parent=5 // pred_check_branch
        %853 = sbr.rel (%p851) target = $region71
      $region70: #{tpu_custom_call.1} parent=5 // pred_region
        %s854 = ssub.s32 %s15, 2
        // Predicated region
        $region72: #{tpu_custom_call.1} parent=70 // pred_check
          %p855 = pneg %p121
        $region73: #{tpu_custom_call.1} parent=70 // pred_check_branch
          %857 = sbr.rel (%p855) target = $region75
        $region74: #{tpu_custom_call.1} parent=70 // pred_region
          %s858 = sand.u32 %s106, 1
          %s859 = scalar_lea.sflag [#allocation6], %s858
          %s860 = sand.u32 %s106, 1
          %s861 = smul.addr %s860, 128
          %s862 = scalar_lea.vmem [#allocation9], %s861
          %863 = dma.done %s859, 2048
        $region75: #{tpu_custom_call.1} parent=70 // pred_fallthru
          _
      $region71: #{tpu_custom_call.1} parent=5 // pred_fallthru
        _
    $region6: #{tpu_custom_call.1} parent=1 // loop_footer
      %s19 = sadd.s32 1, %s15
    $region7: #{tpu_custom_call.1} parent=1 // loop_footer_branch
      %14 = sbr.rel target = $region3
    $region8: #{tpu_custom_call.1} parent=1 // loop_exit
      _
    %864 = vsyncpa [#allocation5], 1
    %s865 = scalar_lea.sflag [#allocation5], 1
    %866 = vsyncpa %s865, 1
    %867 = vsyncpa [#allocation8], 1
    %868 = vsyncpa [#allocation6], 1
    %s869 = scalar_lea.sflag [#allocation6], 1
    %870 = vsyncpa %s869, 1
  %871 = vsyncmov [#allocation3]
  %s872 = vpop.sfrf %871
  %p873 = scmp.eq.s32.totalorder %s872, 0
  %p874 = pneg %p873
  %876 = shalt.err (%p874)
  %s877 = scalar_lea.sflag [#allocation3], 1
  %878 = vsyncmov %s877
  %s879 = vpop.sfrf %878
  %p880 = scmp.eq.s32.totalorder %s879, 0
  %p881 = pneg %p880
  %883 = shalt.err (%p881)

</llo_original>
